<compile_context>
chip_gen: v5e
topology: v5e:2x2
jax: 0.10.0
libtpu: 0.0.40
codegen_flags: <defaults>
</compile_context>

<pallas_src>
import jax
import jax.numpy as jnp
from jax.experimental import pallas as pl
from jax.experimental.pallas import tpu as pltpu


def _chomp_copy_kernel(x_ref, o_ref):
    # Pure tile copy; the trim is carried by the grid / out_shape, not the body.
    o_ref[...] = x_ref[...]


def _round_up(v: int, m: int) -> int:
    return ((v + m - 1) // m) * m


def chomp1d(x: jax.Array, chomp_size: int) -> jax.Array:
    """Pallas equivalent of Chomp1d.forward: x[:, :, :-chomp_size]."""
    n, c, l = x.shape
    assert 0 < chomp_size < l, "chomp_size must be in (0, L)"
    l_out = l - chomp_size

    # Flatten (N, C, L) -> (N*C, L): layout-preserving for contiguous NCL, and
    # gives full 8x128 vreg packing regardless of C.
    r = n * c
    x2d = x.reshape(r, l)

    # Sublane multiple depends on dtype packing (8 for 32-bit, 16 for bf16, ...).
    itemsize = jnp.dtype(x.dtype).itemsize
    sub = 8 * max(1, 4 // itemsize)

    # Lane-dense time tiles (multiple of 128, <= 1024) and sublane-dense row
    # tiles (multiple of `sub`, <= 256): <= 1 MiB per f32 buffer, so the
    # double-buffered in+out pipeline fits comfortably on v5e / v6e / v7x.
    t_tile = min(_round_up(l_out, 128), 1024)
    r_tile = min(_round_up(r, sub), 256)

    grid = (pl.cdiv(r, r_tile), pl.cdiv(l_out, t_tile))

    out2d = pl.pallas_call(
        _chomp_copy_kernel,
        out_shape=jax.ShapeDtypeStruct((r, l_out), x.dtype),
        grid=grid,
        in_specs=[pl.BlockSpec((r_tile, t_tile), lambda i, t: (i, t))],
        out_specs=pl.BlockSpec((r_tile, t_tile), lambda i, t: (i, t)),
        compiler_params=pltpu.CompilerParams(
            dimension_semantics=("parallel", "parallel"),
        ),
    )(x2d)

    return out2d.reshape(n, c, l_out)


if __name__ == "__main__":
    # Small shapes consistent with a TCN conv1d activation: (N=2, C=4, L=16),
    # chomp_size = (kernel_size - 1) * dilation = 3 (e.g. k=4, d=1).
    key = jax.random.PRNGKey(0)
    N, C, L = 2, 4, 16
    chomp_size = 3

    x = jax.random.normal(key, (N, C, L), dtype=jnp.float32)

    out = chomp1d(x, chomp_size)
    jax.block_until_ready(out)

    # Correctness check against the plain-JAX reference of x[:, :, :-chomp_size].
    ref = x[:, :, :-chomp_size]
    assert out.shape == (N, C, L - chomp_size)
    assert out.dtype == x.dtype
    assert jnp.array_equal(out, ref)

    print("KERNEL_OK")
</pallas_src>

<mosaic_0001>
module attributes {stable_mosaic.version = 11 : i64} {
  func.func @_chomp_copy_kernel(%arg0: i32, %arg1: i32, %arg2: memref<8x128xf32, #tpu.memory_space<vmem>>, %arg3: memref<8x128xf32, #tpu.memory_space<vmem>>) attributes {dimension_semantics = [#tpu.dimension_semantics<parallel>, #tpu.dimension_semantics<parallel>], iteration_bounds = array<i64: 1, 1>, scalar_prefetch = 0 : i64, scratch_operands = 0 : i64, tpu.core_type = #tpu.core_type<tc>, window_params = [{transform_indices = @transform_0, window_bounds = array<i64: 8, 128>}, {transform_indices = @transform_1, window_bounds = array<i64: 8, 128>}]} {
    %c0 = arith.constant 0 : index
    %c0_0 = arith.constant 0 : index
    %0 = vector.load %arg2[%c0, %c0_0] : memref<8x128xf32, #tpu.memory_space<vmem>>, vector<8x128xf32>
    %c0_1 = arith.constant 0 : index
    %c0_2 = arith.constant 0 : index
    %1 = vector.load %arg3[%c0_1, %c0_2] : memref<8x128xf32, #tpu.memory_space<vmem>>, vector<8x128xf32>
    tpu.vector_store %arg3[%c0_1, %c0_2], %0 {strides = array<i32>} : memref<8x128xf32, #tpu.memory_space<vmem>>, vector<8x128xf32>,
    return
  }
  func.func @transform_0(%arg0: i32, %arg1: i32) -> (i32, i32) {
    %c0_i32 = arith.constant 0 : i32
    return %arg0, %arg1 : i32, i32
  }
  func.func @transform_1(%arg0: i32, %arg1: i32) -> (i32, i32) {
    %c0_i32 = arith.constant 0 : i32
    return %arg0, %arg1 : i32, i32
  }
}

</mosaic_0001>

<llo_original>
// kernel: tpu_custom_call.1
$region0: #{tpu_custom_call.1}
  #allocation0 [shape = 'u32[]', space=smem, size = 0x4, offset = 0x4, fixed_abs, tag = 'smem constant byte address 0x4 - core index']
  #allocation1 [shape = 'u32[72,128]{1,0:T(1,128)}', space=vmem, size = 0x9000, scoped, tag = 'internal scratch']
  %s0 = inlined_call_operand.hbm [shape: f32[8,16], index: 0, kind: input, shape index: {}]
  %s1 = inlined_call_operand.hbm [shape: f32[8,13], index: 1, kind: output, shape index: {}]
  %s2 = sld [smem:[#allocation0]]
  $region18: #{tpu_custom_call.1} parent=0
    _
  %s4 = ssub.s32 1, %s2
  %s5 = scalar_select 0, %s4, %s2
  $region1: #{tpu_custom_call.1} parent=0
    #allocation2 [shape = 'u8[4096]{0}', space=vmem, size = 0x1000, scoped, tag = 'input window, operand 0, single buffered']
    #allocation3 [shape = 's32[1]{0}', space=sflag, size = 0x4, scoped, tag = 'scoped memory for tpu_custom_call.1']
    #allocation4 [shape = 's32[1]{0}', space=sflag, size = 0x4, scoped, tag = 'scoped memory for tpu_custom_call.1']
    #allocation5 [shape = 'u8[4096]{0}', space=vmem, size = 0x1000, scoped, tag = 'output window, operand 0, single buffered']
    %6 = vsyncpa [#allocation3], 0
    %7 = vsyncpa [#allocation4], 0
    // Predicated region
    $region2: #{tpu_custom_call.1} parent=1 // pred_check
      _
    $region3: #{tpu_custom_call.1} parent=1 // pred_check_branch
      %9 = sbr.rel (0) target = $region5
    $region4: #{tpu_custom_call.1} parent=1 // pred_region
      %11 = vsyncadd [#allocation3], 0
      %s13 = sshll.u32 %s0, 4
      %s14 = int_to_ptr.hbm [resolvable:$true] %s13
      %s15 = sshll.u32 [#allocation2], 4
      %s16 = int_to_ptr.vmem [resolvable:$true] %s15
      %18 = dma.hbm_to_vmem [thread:$0]  %s14, 128, %s16, [#allocation3]
    $region5: #{tpu_custom_call.1} parent=1 // pred_fallthru
      _
    // Predicated region
    $region6: #{tpu_custom_call.1} parent=1 // pred_check
      _
    $region7: #{tpu_custom_call.1} parent=1 // pred_check_branch
      %20 = sbr.rel (0) target = $region9
    $region8: #{tpu_custom_call.1} parent=1 // pred_region
      %22 = dma.done [#allocation3], 128
    $region9: #{tpu_custom_call.1} parent=1 // pred_fallthru
      _
    %v23 = vld [vmem:[#allocation2] sm:$0xff]
    %24 = vst [vmem:[#allocation5] sm:$0xff] %v23
    // Predicated region
    $region10: #{tpu_custom_call.1} parent=1 // pred_check
      _
    $region11: #{tpu_custom_call.1} parent=1 // pred_check_branch
      %26 = sbr.rel (0) target = $region13
    $region12: #{tpu_custom_call.1} parent=1 // pred_region
      %28 = vsyncadd [#allocation4], 0
      %s30 = sshll.u32 [#allocation5], 4
      %s31 = int_to_ptr.vmem [resolvable:$true] %s30
      %s32 = sshll.u32 %s1, 4
      %s33 = int_to_ptr.hbm [resolvable:$true] %s32
      %35 = dma.vmem_to_hbm [thread:$0]  %s31, 128, %s33, [#allocation4]
    $region13: #{tpu_custom_call.1} parent=1 // pred_fallthru
      _
    // Predicated region
    $region14: #{tpu_custom_call.1} parent=1 // pred_check
      _
    $region15: #{tpu_custom_call.1} parent=1 // pred_check_branch
      %37 = sbr.rel (0) target = $region17
    $region16: #{tpu_custom_call.1} parent=1 // pred_region
      %39 = dma.done [#allocation4], 128
    $region17: #{tpu_custom_call.1} parent=1 // pred_fallthru
      _
    %40 = vsyncpa [#allocation3], 1
    %41 = vsyncpa [#allocation4], 1

</llo_original>
